<compile_context>
chip_gen: v6e
topology: v6e:2x2x1
jax: 0.10.0
libtpu: 0.0.40
codegen_flags: <defaults>
</compile_context>

<pallas_src>
import functools

import jax
import jax.numpy as jnp
from jax.experimental import pallas as pl
from jax.experimental.pallas import tpu as pltpu


def _expert3_kernel(a_ref, b_ref, x_ref, w1_ref, b1_ref, w2_ref, b2_ref,
                    o_ref, *, d_split):
    # a_ref/b_ref: (1,) SMEM scalars
    # x_ref:  (TB, L*D) VMEM (lane-dense flattened slots)
    # w1_ref: (L*D, D)   b1_ref/b2_ref: (1, D)   w2_ref: (D, D)   o_ref: (TB, D)
    a = a_ref[0]
    b = b_ref[0]
    ld = x_ref.shape[1]

    # Fold cat([x[:3]*a, x[3:]*b]) into a per-column scale: flattened column
    # index = slot*D + d, so col < 3*D  <=>  slot < 3.  d_split = min(3, L)*D
    # keeps this correct when L <= 3 (everything scaled by a, as in PyTorch).
    col = jax.lax.broadcasted_iota(jnp.int32, (1, ld), 1)
    scale = jnp.where(col < d_split, a, b)
    x = x_ref[...] * scale

    # fc1: one deep-K matmul (K = L*D), bias, ReLU.
    h = jnp.dot(x, w1_ref[...], preferred_element_type=jnp.float32) + b1_ref[...]
    h = jnp.maximum(h, 0.0)

    # fc2
    o = jnp.dot(h, w2_ref[...], preferred_element_type=jnp.float32) + b2_ref[...]
    o_ref[...] = o.astype(o_ref.dtype)


def expert3_forward(x_lbd, a, b, w1, b1, w2, b2, *, batch_block=256):
    """x_lbd: (L, B, D).  w1: (L*D, D) (in, out).  w2: (D, D) (in, out)."""
    L, B, D = x_lbd.shape
    LD = L * D

    # Pure layout op (no arithmetic): (L, B, D) -> (B, L*D), matching the
    # flattened nn.Linear input layout; lane-dense last dim of L*D.
    x = jnp.transpose(x_lbd, (1, 0, 2)).reshape(B, LD)

    # Batch tile: multiple of 8 sublanes; pad B up so the grid divides evenly.
    tb = min(batch_block, B)
    tb = max(8, ((tb + 7) // 8) * 8)
    b_pad = ((B + tb - 1) // tb) * tb
    if b_pad != B:
        x = jnp.pad(x, ((0, b_pad - B), (0, 0)))
    grid = (b_pad // tb,)

    a_s = a.reshape(1).astype(jnp.float32)
    b_s = b.reshape(1).astype(jnp.float32)
    b1_2d = b1.reshape(1, D)
    b2_2d = b2.reshape(1, D)

    kernel = functools.partial(_expert3_kernel, d_split=min(3, L) * D)
    smem = pltpu.MemorySpace.SMEM

    out = pl.pallas_call(
        kernel,
        out_shape=jax.ShapeDtypeStruct((b_pad, D), jnp.float32),
        grid=grid,
        in_specs=[
            pl.BlockSpec(memory_space=smem),            # a scalar
            pl.BlockSpec(memory_space=smem),            # b scalar
            pl.BlockSpec((tb, LD), lambda i: (i, 0)),   # x, streamed per step
            pl.BlockSpec((LD, D), lambda i: (0, 0)),    # fc1 weight, resident
            pl.BlockSpec((1, D), lambda i: (0, 0)),     # fc1 bias, resident
            pl.BlockSpec((D, D), lambda i: (0, 0)),     # fc2 weight, resident
            pl.BlockSpec((1, D), lambda i: (0, 0)),     # fc2 bias, resident
        ],
        out_specs=pl.BlockSpec((tb, D), lambda i: (i, 0)),
        compiler_params=pltpu.CompilerParams(
            dimension_semantics=("parallel",)),
    )(a_s, b_s, x, w1, b1_2d, w2, b2_2d)
    # TODO(synk): to batch many independent expert3 instances into one call,
    # add a leading "parallel" expert grid axis and concatenate per-expert
    # outputs along the last axis so the out_spec stays lane-dense (>=128).
    if b_pad != B:
        out = out[:B]
    return out


def expert3_reference(x_lbd, a, b, w1, b1, w2, b2):
    x = jnp.concatenate([x_lbd[:3] * a, x_lbd[3:] * b], axis=0)
    B = x.shape[1]
    x = jnp.transpose(x, (1, 0, 2)).reshape(B, -1)
    h = jnp.maximum(x @ w1 + b1, 0.0)
    return h @ w2 + b2


if __name__ == "__main__":
    # Small shapes consistent with the module: input_num=8, input_dim=32, batch=8.
    L, B, D = 8, 8, 32

    key = jax.random.PRNGKey(0)
    kx, kw1, kb1, kw2, kb2, ka, kb = jax.random.split(key, 7)

    x = jax.random.normal(kx, (L, B, D), dtype=jnp.float32)

    # Deterministic synthetic parameters (nn.Linear(D*L, D), nn.Linear(D, D)),
    # stored (in, out).
    w1 = jax.random.normal(kw1, (L * D, D), dtype=jnp.float32) * 0.05
    b1 = jax.random.normal(kb1, (D,), dtype=jnp.float32) * 0.05
    w2 = jax.random.normal(kw2, (D, D), dtype=jnp.float32) * 0.05
    b2 = jax.random.normal(kb2, (D,), dtype=jnp.float32) * 0.05
    a = jax.random.normal(ka, (1,), dtype=jnp.float32)
    b = jax.random.normal(kb, (1,), dtype=jnp.float32)

    out = expert3_forward(x, a, b, w1, b1, w2, b2)
    out = jax.block_until_ready(out)

    ref = expert3_reference(x, a, b, w1, b1, w2, b2)
    assert out.shape == (B, D)
    assert jnp.allclose(out, ref, atol=1e-4, rtol=1e-4)

    print("KERNEL_OK")
</pallas_src>

<mosaic_0001>
module attributes {stable_mosaic.version = 11 : i64} {
  func.func @_expert3_kernel(%arg0: i32, %arg1: memref<1xf32, #tpu.memory_space<smem>>, %arg2: memref<1xf32, #tpu.memory_space<smem>>, %arg3: memref<8x256xf32, #tpu.memory_space<vmem>>, %arg4: memref<256x32xf32, #tpu.memory_space<vmem>>, %arg5: memref<1x32xf32, #tpu.memory_space<vmem>>, %arg6: memref<32x32xf32, #tpu.memory_space<vmem>>, %arg7: memref<1x32xf32, #tpu.memory_space<vmem>>, %arg8: memref<8x32xf32, #tpu.memory_space<vmem>>) attributes {dimension_semantics = [#tpu.dimension_semantics<parallel>], iteration_bounds = array<i64: 1>, scalar_prefetch = 0 : i64, scratch_operands = 0 : i64, tpu.core_type = #tpu.core_type<tc>, window_params = [{transform_indices = @transform_0, window_bounds = array<i64: 1>}, {transform_indices = @transform_1, window_bounds = array<i64: 1>}, {transform_indices = @transform_2, window_bounds = array<i64: 8, 256>}, {pipeline_mode = #tpu.pipeline_mode<synchronous>, transform_indices = @transform_3, window_bounds = array<i64: 256, 32>}, {pipeline_mode = #tpu.pipeline_mode<synchronous>, transform_indices = @transform_4, window_bounds = array<i64: 1, 32>}, {pipeline_mode = #tpu.pipeline_mode<synchronous>, transform_indices = @transform_5, window_bounds = array<i64: 32, 32>}, {pipeline_mode = #tpu.pipeline_mode<synchronous>, transform_indices = @transform_6, window_bounds = array<i64: 1, 32>}, {transform_indices = @transform_7, window_bounds = array<i64: 8, 32>}]} {
    %c0 = arith.constant 0 : index
    %0 = memref.load %arg1[%c0] : memref<1xf32, #tpu.memory_space<smem>>
    %c0_0 = arith.constant 0 : index
    %1 = memref.load %arg2[%c0_0] : memref<1xf32, #tpu.memory_space<smem>>
    %2 = tpu.iota {dimensions = array<i32: 1>} : vector<1x256xi32>
    %c96_i32 = arith.constant 96 : i32
    %3 = vector.broadcast %c96_i32 : i32 to vector<1x256xi32>
    %4 = arith.cmpi slt, %2, %3 : vector<1x256xi32>
    %5 = vector.broadcast %0 : f32 to vector<1x256xf32>
    %6 = vector.broadcast %1 : f32 to vector<1x256xf32>
    %7 = arith.select %4, %5, %6 : vector<1x256xi1>, vector<1x256xf32>
    %c0_1 = arith.constant 0 : index
    %c0_2 = arith.constant 0 : index
    %8 = vector.load %arg3[%c0_1, %c0_2] : memref<8x256xf32, #tpu.memory_space<vmem>>, vector<8x256xf32>
    %9 = vector.broadcast %7 : vector<1x256xf32> to vector<8x256xf32>
    %10 = arith.mulf %8, %9 : vector<8x256xf32>
    %c0_3 = arith.constant 0 : index
    %c0_4 = arith.constant 0 : index
    %11 = vector.load %arg4[%c0_3, %c0_4] : memref<256x32xf32, #tpu.memory_space<vmem>>, vector<256x32xf32>
    %cst = arith.constant dense<0.000000e+00> : vector<8x32xf32>
    %12 = tpu.matmul %10, %11, %cst {dimension_numbers = #tpu.dot_dimension_numbers<[1], [0], [0], [1], [0, 0, 1, 1], [], []>} : vector<8x256xf32>, vector<256x32xf32>, vector<8x32xf32> -> vector<8x32xf32>
    %c0_5 = arith.constant 0 : index
    %c0_6 = arith.constant 0 : index
    %13 = vector.load %arg5[%c0_5, %c0_6] : memref<1x32xf32, #tpu.memory_space<vmem>>, vector<1x32xf32>
    %14 = vector.broadcast %13 : vector<1x32xf32> to vector<8x32xf32>
    %15 = arith.addf %12, %14 : vector<8x32xf32>
    %cst_7 = arith.constant 0.000000e+00 : f32
    %16 = vector.broadcast %cst_7 : f32 to vector<8x32xf32>
    %17 = arith.maximumf %15, %16 : vector<8x32xf32>
    %c0_8 = arith.constant 0 : index
    %c0_9 = arith.constant 0 : index
    %18 = vector.load %arg6[%c0_8, %c0_9] : memref<32x32xf32, #tpu.memory_space<vmem>>, vector<32x32xf32>
    %cst_10 = arith.constant dense<0.000000e+00> : vector<8x32xf32>
    %19 = tpu.matmul %17, %18, %cst_10 {dimension_numbers = #tpu.dot_dimension_numbers<[1], [0], [0], [1], [0, 0, 1, 1], [], []>} : vector<8x32xf32>, vector<32x32xf32>, vector<8x32xf32> -> vector<8x32xf32>
    %c0_11 = arith.constant 0 : index
    %c0_12 = arith.constant 0 : index
    %20 = vector.load %arg7[%c0_11, %c0_12] : memref<1x32xf32, #tpu.memory_space<vmem>>, vector<1x32xf32>
    %21 = vector.broadcast %20 : vector<1x32xf32> to vector<8x32xf32>
    %22 = arith.addf %19, %21 : vector<8x32xf32>
    %c0_13 = arith.constant 0 : index
    %c0_14 = arith.constant 0 : index
    %23 = vector.load %arg8[%c0_13, %c0_14] : memref<8x32xf32, #tpu.memory_space<vmem>>, vector<8x32xf32>
    tpu.vector_store %arg8[%c0_13, %c0_14], %22 {strides = array<i32>} : memref<8x32xf32, #tpu.memory_space<vmem>>, vector<8x32xf32>,
    return
  }
  func.func @transform_0(%arg0: i32) -> i32 {
    %c0_i32 = arith.constant 0 : i32
    %c0_i32_0 = arith.constant 0 : i32
    return %c0_i32 : i32
  }
  func.func @transform_1(%arg0: i32) -> i32 {
    %c0_i32 = arith.constant 0 : i32
    %c0_i32_0 = arith.constant 0 : i32
    return %c0_i32 : i32
  }
  func.func @transform_2(%arg0: i32) -> (i32, i32) {
    %c0_i32 = arith.constant 0 : i32
    %c0_i32_0 = arith.constant 0 : i32
    return %arg0, %c0_i32 : i32, i32
  }
  func.func @transform_3(%arg0: i32) -> (i32, i32) {
    %c0_i32 = arith.constant 0 : i32
    %c0_i32_0 = arith.constant 0 : i32
    %c0_i32_1 = arith.constant 0 : i32
    return %c0_i32, %c0_i32_0 : i32, i32
  }
  func.func @transform_4(%arg0: i32) -> (i32, i32) {
    %c0_i32 = arith.constant 0 : i32
    %c0_i32_0 = arith.constant 0 : i32
    %c0_i32_1 = arith.constant 0 : i32
    return %c0_i32, %c0_i32_0 : i32, i32
  }
  func.func @transform_5(%arg0: i32) -> (i32, i32) {
    %c0_i32 = arith.constant 0 : i32
    %c0_i32_0 = arith.constant 0 : i32
    %c0_i32_1 = arith.constant 0 : i32
    return %c0_i32, %c0_i32_0 : i32, i32
  }
  func.func @transform_6(%arg0: i32) -> (i32, i32) {
    %c0_i32 = arith.constant 0 : i32
    %c0_i32_0 = arith.constant 0 : i32
    %c0_i32_1 = arith.constant 0 : i32
    return %c0_i32, %c0_i32_0 : i32, i32
  }
  func.func @transform_7(%arg0: i32) -> (i32, i32) {
    %c0_i32 = arith.constant 0 : i32
    %c0_i32_0 = arith.constant 0 : i32
    return %arg0, %c0_i32 : i32, i32
  }
}

</mosaic_0001>

<llo_original>
// kernel: tpu_custom_call.1
$region0: #{tpu_custom_call.1}
  #allocation0 [shape = 'u32[]', space=smem, size = 0x4, offset = 0x4, fixed_abs, tag = 'smem constant byte address 0x4 - core index']
  #allocation1 [shape = 'u32[144,128]{1,0:T(1,128)}', space=vmem, size = 0x12000, scoped, tag = 'internal scratch']
  #allocation2 [shape = 'f32[1]{0:T(128)S(6)}', space=smem, size = 0x200, scoped, tag = 'scoped memory for tpu_custom_call.1']
  #allocation3 [shape = 'f32[1]{0:T(128)S(6)}', space=smem, size = 0x200, scoped, tag = 'scoped memory for tpu_custom_call.1']
  %s0 = inlined_call_operand.<no memory space> [shape: f32[1], index: 0, kind: input, shape index: {}]
  %s1 = inlined_call_operand.<no memory space> [shape: f32[1], index: 1, kind: input, shape index: {}]
  %s2 = inlined_call_operand.vmem [shape: f32[8,256], index: 2, kind: input, shape index: {}]
  %s3 = inlined_call_operand.vmem [shape: f32[256,32], index: 3, kind: input, shape index: {}]
  %s4 = inlined_call_operand.vmem [shape: f32[1,32], index: 4, kind: input, shape index: {}]
  %s5 = inlined_call_operand.vmem [shape: f32[32,32], index: 5, kind: input, shape index: {}]
  %s6 = inlined_call_operand.vmem [shape: f32[1,32], index: 6, kind: input, shape index: {}]
  %s7 = inlined_call_operand.hbm [shape: f32[8,32], index: 7, kind: output, shape index: {}]
  %s8 = sld [smem:[#allocation0]]
  $region38: #{tpu_custom_call.1} parent=0
    _
  %s10 = ssub.s32 1, %s8
  %s11 = scalar_select 0, %s10, %s8
  %12 = sst [smem:[#allocation2]] %s0
  %13 = sst [smem:[#allocation3]] %s1
  $region1: #{tpu_custom_call.1} parent=0
    #allocation4 [shape = 'u8[4096]{0}', space=vmem, size = 0x1000, scoped, tag = 'output window, operand 0, single buffered']
    #allocation5 [shape = 's32[1]{0}', space=sflag, size = 0x4, scoped, tag = 'scoped memory for tpu_custom_call.1']
    %14 = vsyncpa [#allocation5], 0
    // Predicated region
    $region2: #{tpu_custom_call.1} parent=1 // pred_check
      _
    $region3: #{tpu_custom_call.1} parent=1 // pred_check_branch
      %16 = sbr.rel (0) target = $region5
    $region4: #{tpu_custom_call.1} parent=1 // pred_region
      _
    $region5: #{tpu_custom_call.1} parent=1 // pred_fallthru
      _
    // Predicated region
    $region6: #{tpu_custom_call.1} parent=1 // pred_check
      _
    $region7: #{tpu_custom_call.1} parent=1 // pred_check_branch
      %18 = sbr.rel (0) target = $region9
    $region8: #{tpu_custom_call.1} parent=1 // pred_region
      _
    $region9: #{tpu_custom_call.1} parent=1 // pred_fallthru
      _
    // Predicated region
    $region10: #{tpu_custom_call.1} parent=1 // pred_check
      _
    $region11: #{tpu_custom_call.1} parent=1 // pred_check_branch
      %20 = sbr.rel (0) target = $region13
    $region12: #{tpu_custom_call.1} parent=1 // pred_region
      _
    $region13: #{tpu_custom_call.1} parent=1 // pred_fallthru
      _
    // Predicated region
    $region14: #{tpu_custom_call.1} parent=1 // pred_check
      _
    $region15: #{tpu_custom_call.1} parent=1 // pred_check_branch
      %22 = sbr.rel (0) target = $region17
    $region16: #{tpu_custom_call.1} parent=1 // pred_region
      _
    $region17: #{tpu_custom_call.1} parent=1 // pred_fallthru
      _
    // Predicated region
    $region18: #{tpu_custom_call.1} parent=1 // pred_check
      _
    $region19: #{tpu_custom_call.1} parent=1 // pred_check_branch
      %24 = sbr.rel (0) target = $region21
    $region20: #{tpu_custom_call.1} parent=1 // pred_region
      _
    $region21: #{tpu_custom_call.1} parent=1 // pred_fallthru
      _
    // Predicated region
    $region22: #{tpu_custom_call.1} parent=1 // pred_check
      _
    $region23: #{tpu_custom_call.1} parent=1 // pred_check_branch
      %26 = sbr.rel (0) target = $region25
    $region24: #{tpu_custom_call.1} parent=1 // pred_region
      _
    $region25: #{tpu_custom_call.1} parent=1 // pred_fallthru
      _
    // Predicated region
    $region26: #{tpu_custom_call.1} parent=1 // pred_check
      _
    $region27: #{tpu_custom_call.1} parent=1 // pred_check_branch
      %28 = sbr.rel (0) target = $region29
    $region28: #{tpu_custom_call.1} parent=1 // pred_region
      _
    $region29: #{tpu_custom_call.1} parent=1 // pred_fallthru
      _
    %s29 = sld [smem:[#allocation2]]
    %s30 = sld [smem:[#allocation3]]
    %v31 = vlaneseq
    %v32 = vand.u32 %v31, 127
    %v33 = vadd.s32 %v32, 128
    %vm34 = vcmp.lt.s32.totalorder %v32, 96
    %vm35 = vcmp.lt.s32.totalorder %v33, 96
    %v36 = vstv %s29
    %v37 = vstv %s30
    %v38 = vsel %vm34, %v36, %v37
    %v39 = vsel %vm35, %v36, %v37
    %v40 = vld [vmem:[%s2] sm:$0xff]
    %v41 = vld [vmem:[%s2 + $0x8] sm:$0xff]
    %v42 = vmul.f32 %v40, %v38
    %v43 = vmul.f32 %v41, %v39
    %v44 = vld [vmem:[%s3] sm:$0xff]
    %v45 = vld [vmem:[%s3 + $0x8] sm:$0xff]
    %v46 = vld [vmem:[%s3 + $0x10] sm:$0xff]
    %v47 = vld [vmem:[%s3 + $0x18] sm:$0xff]
    %v48 = vld [vmem:[%s3 + $0x20] sm:$0xff]
    %v49 = vld [vmem:[%s3 + $0x28] sm:$0xff]
    %v50 = vld [vmem:[%s3 + $0x30] sm:$0xff]
    %v51 = vld [vmem:[%s3 + $0x38] sm:$0xff]
    %v52 = vld [vmem:[%s3 + $0x40] sm:$0xff]
    %v53 = vld [vmem:[%s3 + $0x48] sm:$0xff]
    %v54 = vld [vmem:[%s3 + $0x50] sm:$0xff]
    %v55 = vld [vmem:[%s3 + $0x58] sm:$0xff]
    %v56 = vld [vmem:[%s3 + $0x60] sm:$0xff]
    %v57 = vld [vmem:[%s3 + $0x68] sm:$0xff]
    %v58 = vld [vmem:[%s3 + $0x70] sm:$0xff]
    %v59 = vld [vmem:[%s3 + $0x78] sm:$0xff]
    %v60 = vld [vmem:[%s3 + $0x80] sm:$0xff]
    %v61 = vld [vmem:[%s3 + $0x88] sm:$0xff]
    %v62 = vld [vmem:[%s3 + $0x90] sm:$0xff]
    %v63 = vld [vmem:[%s3 + $0x98] sm:$0xff]
    %v64 = vld [vmem:[%s3 + $0xa0] sm:$0xff]
    %v65 = vld [vmem:[%s3 + $0xa8] sm:$0xff]
    %v66 = vld [vmem:[%s3 + $0xb0] sm:$0xff]
    %v67 = vld [vmem:[%s3 + $0xb8] sm:$0xff]
    %v68 = vld [vmem:[%s3 + $0xc0] sm:$0xff]
    %v69 = vld [vmem:[%s3 + $0xc8] sm:$0xff]
    %v70 = vld [vmem:[%s3 + $0xd0] sm:$0xff]
    %v71 = vld [vmem:[%s3 + $0xd8] sm:$0xff]
    %v72 = vld [vmem:[%s3 + $0xe0] sm:$0xff]
    %v73 = vld [vmem:[%s3 + $0xe8] sm:$0xff]
    %v74 = vld [vmem:[%s3 + $0xf0] sm:$0xff]
    %v75 = vld [vmem:[%s3 + $0xf8] sm:$0xff]
    %v76 = vld [vmem:[%s4] sm:$0x1]
    %v78 = vlaneseq
    %v79 = vshrl.u32 %v78, 7
    %v80 = vsub.s32 0, %v79
    %v81 = vrot.slane %v76, %v80
    %83 = vmatprep.subr.mxu0 0.0
    %84 = vmatpush1.msra.mxu0 %v59
    %85 = vmatprep.subr.mxu0 0.0
    %86 = vmatpush1.msra.mxu0 %v58
    %87 = vmatprep.subr.mxu0 0.0
    %88 = vmatpush1.msra.mxu0 %v57
    %89 = vmatprep.subr.mxu0 0.0
    %90 = vmatpush1.msra.mxu0 %v56
    %91 = vmatprep.subr.mxu0 0.0
    %92 = vmatpush1.msra.mxu0 %v55
    %93 = vmatprep.subr.mxu0 0.0
    %94 = vmatpush1.msra.mxu0 %v54
    %95 = vmatprep.subr.mxu0 0.0
    %96 = vmatpush1.msra.mxu0 %v53
    %97 = vmatprep.subr.mxu0 0.0
    %98 = vmatpush1.msra.mxu0 %v52
    %99 = vmatprep.subr.mxu0 0.0
    %100 = vmatpush1.msra.mxu0 %v51
    %101 = vmatprep.subr.mxu0 0.0
    %102 = vmatpush1.msra.mxu0 %v50
    %103 = vmatprep.subr.mxu0 0.0
    %104 = vmatpush1.msra.mxu0 %v49
    %105 = vmatprep.subr.mxu0 0.0
    %106 = vmatpush1.msra.mxu0 %v48
    %107 = vmatprep.subr.mxu0 0.0
    %108 = vmatpush1.msra.mxu0 %v47
    %109 = vmatprep.subr.mxu0 0.0
    %110 = vmatpush1.msra.mxu0 %v46
    %111 = vmatprep.subr.mxu0 0.0
    %112 = vmatpush1.msra.mxu0 %v45
    %113 = vmatprep.subr.mxu0 0.0
    %114 = vmatpush1.msra.mxu0 %v44
    %115 = vmatprep.subr.mxu0 0.0
    %116 = vmatpush2.msra.mxu0 %v75
    %117 = vmatprep.subr.mxu0 0.0
    %118 = vmatpush2.msra.mxu0 %v74
    %119 = vmatprep.subr.mxu0 0.0
    %120 = vmatpush2.msra.mxu0 %v73
    %121 = vmatprep.subr.mxu0 0.0
    %122 = vmatpush2.msra.mxu0 %v72
    %123 = vmatprep.subr.mxu0 0.0
    %124 = vmatpush2.msra.mxu0 %v71
    %125 = vmatprep.subr.mxu0 0.0
    %126 = vmatpush2.msra.mxu0 %v70
    %127 = vmatprep.subr.mxu0 0.0
    %128 = vmatpush2.msra.mxu0 %v69
    %129 = vmatprep.subr.mxu0 0.0
    %130 = vmatpush2.msra.mxu0 %v68
    %131 = vmatprep.subr.mxu0 0.0
    %132 = vmatpush2.msra.mxu0 %v67
    %133 = vmatprep.subr.mxu0 0.0
    %134 = vmatpush2.msra.mxu0 %v66
    %135 = vmatprep.subr.mxu0 0.0
    %136 = vmatpush2.msra.mxu0 %v65
    %137 = vmatprep.subr.mxu0 0.0
    %138 = vmatpush2.msra.mxu0 %v64
    %139 = vmatprep.subr.mxu0 0.0
    %140 = vmatpush2.msra.mxu0 %v63
    %141 = vmatprep.subr.mxu0 0.0
    %142 = vmatpush2.msra.mxu0 %v62
    %143 = vmatprep.subr.mxu0 0.0
    %144 = vmatpush2.msra.mxu0 %v61
    %145 = vmatprep.subr.mxu0 0.0
    %146 = vmatpush2.msra.mxu0 %v60
    %147 = vmatprep.mubr.f32.mxu0 %v43
    %148 = vmatmul.mubr.f32.gmra.mxu0 %v42
    %v149 = vpop.f32.mrf.mxu0
    %v150 = vadd.f32 %v81, %v149
    %v151 = vpop.f32.mrf.mxu0
    %152 = vdwg.mxu0
    %v153 = vmax.f32 %v150, 0.0
    %v154 = vld [vmem:[%s5] sm:$0xff]
    %v155 = vld [vmem:[%s5 + $0x8] sm:$0xff]
    %v156 = vld [vmem:[%s5 + $0x10] sm:$0xff]
    %v157 = vld [vmem:[%s5 + $0x18] sm:$0xff]
    %v158 = vld [vmem:[%s6] sm:$0x1]
    %v160 = vlaneseq
    %v161 = vshrl.u32 %v160, 7
    %v162 = vsub.s32 0, %v161
    %v163 = vrot.slane %v158, %v162
    %vm165 = vcmask 261120
    %v167 = vsel %vm165, %v153, 0
    %169 = vmatprep.subr.mxu0 0.0
    %170 = vmatpush1.msra.mxu0 0.0
    %171 = vmatprep.subr.mxu0 0.0
    %172 = vmatpush1.msra.mxu0 0.0
    %173 = vmatprep.subr.mxu0 0.0
    %174 = vmatpush1.msra.mxu0 0.0
    %175 = vmatprep.subr.mxu0 0.0
    %176 = vmatpush1.msra.mxu0 0.0
    %177 = vmatprep.subr.mxu0 0.0
    %178 = vmatpush1.msra.mxu0 0.0
    %179 = vmatprep.subr.mxu0 0.0
    %180 = vmatpush1.msra.mxu0 0.0
    %181 = vmatprep.subr.mxu0 0.0
    %182 = vmatpush1.msra.mxu0 0.0
    %183 = vmatprep.subr.mxu0 0.0
    %184 = vmatpush1.msra.mxu0 0.0
    %185 = vmatprep.subr.mxu0 0.0
    %186 = vmatpush1.msra.mxu0 0.0
    %187 = vmatprep.subr.mxu0 0.0
    %188 = vmatpush1.msra.mxu0 0.0
    %189 = vmatprep.subr.mxu0 0.0
    %190 = vmatpush1.msra.mxu0 0.0
    %191 = vmatprep.subr.mxu0 0.0
    %192 = vmatpush1.msra.mxu0 0.0
    %193 = vmatprep.subr.mxu0 0.0
    %194 = vmatpush1.msra.mxu0 %v157
    %195 = vmatprep.subr.mxu0 0.0
    %196 = vmatpush1.msra.mxu0 %v156
    %197 = vmatprep.subr.mxu0 0.0
    %198 = vmatpush1.msra.mxu0 %v155
    %199 = vmatprep.subr.mxu0 0.0
    %200 = vmatpush1.msra.mxu0 %v154
    %201 = vmatprep.subr.mxu0 0.0
    %202 = vmatpush2.msra.mxu0 0.0
    %203 = vmatprep.subr.mxu0 0.0
    %204 = vmatpush2.msra.mxu0 0.0
    %205 = vmatprep.subr.mxu0 0.0
    %206 = vmatpush2.msra.mxu0 0.0
    %207 = vmatprep.subr.mxu0 0.0
    %208 = vmatpush2.msra.mxu0 0.0
    %209 = vmatprep.subr.mxu0 0.0
    %210 = vmatpush2.msra.mxu0 0.0
    %211 = vmatprep.subr.mxu0 0.0
    %212 = vmatpush2.msra.mxu0 0.0
    %213 = vmatprep.subr.mxu0 0.0
    %214 = vmatpush2.msra.mxu0 0.0
    %215 = vmatprep.subr.mxu0 0.0
    %216 = vmatpush2.msra.mxu0 0.0
    %217 = vmatprep.subr.mxu0 0.0
    %218 = vmatpush2.msra.mxu0 0.0
    %219 = vmatprep.subr.mxu0 0.0
    %220 = vmatpush2.msra.mxu0 0.0
    %221 = vmatprep.subr.mxu0 0.0
    %222 = vmatpush2.msra.mxu0 0.0
    %223 = vmatprep.subr.mxu0 0.0
    %224 = vmatpush2.msra.mxu0 0.0
    %225 = vmatprep.subr.mxu0 0.0
    %226 = vmatpush2.msra.mxu0 0.0
    %227 = vmatprep.subr.mxu0 0.0
    %228 = vmatpush2.msra.mxu0 0.0
    %229 = vmatprep.subr.mxu0 0.0
    %230 = vmatpush2.msra.mxu0 0.0
    %231 = vmatprep.subr.mxu0 0.0
    %232 = vmatpush2.msra.mxu0 0.0
    %233 = vmatprep.mubr.f32.mxu0 0.0
    %234 = vmatmul.mubr.f32.gmra.mxu0 %v167
    %v235 = vpop.f32.mrf.mxu0
    %v236 = vadd.f32 %v163, %v235
    %v237 = vpop.f32.mrf.mxu0
    %238 = vdwg.mxu0
    %239 = vst.msk [vmem:[#allocation4] sm:$0xff] %vm165, %v236
    // Predicated region
    $region30: #{tpu_custom_call.1} parent=1 // pred_check
      _
    $region31: #{tpu_custom_call.1} parent=1 // pred_check_branch
      %241 = sbr.rel (0) target = $region33
    $region32: #{tpu_custom_call.1} parent=1 // pred_region
      %s243 = ssub.s32 128, 128
      %244 = vsyncadd [#allocation5], %s243
      %s246 = sshll.u32 [#allocation4], 4
      %s247 = int_to_ptr.vmem [resolvable:$true] %s246
      %249 = dma.vmem_to_hbm [thread:$0]  %s247, 128, %s7, [#allocation5]
    $region33: #{tpu_custom_call.1} parent=1 // pred_fallthru
      _
    // Predicated region
    $region34: #{tpu_custom_call.1} parent=1 // pred_check
      _
    $region35: #{tpu_custom_call.1} parent=1 // pred_check_branch
      %251 = sbr.rel (0) target = $region37
    $region36: #{tpu_custom_call.1} parent=1 // pred_region
      %252 = dma.done [#allocation5], 128
    $region37: #{tpu_custom_call.1} parent=1 // pred_fallthru
      _
    %253 = vsyncpa [#allocation5], 1

</llo_original>
